<compile_context>
chip_gen: v6e
topology: v6e:2x2x1
jax: 0.10.0
libtpu: 0.0.40
codegen_flags: <defaults>
</compile_context>

<pallas_src>
import functools
import math
from typing import NamedTuple

import jax
import jax.numpy as jnp
from jax import lax
from jax.experimental import pallas as pl
from jax.experimental.pallas import tpu as pltpu


# ----------------------------------------------------------------------------
# Kernels
# ----------------------------------------------------------------------------

_INV_SQRT2 = 1.0 / math.sqrt(2.0)


def _linear_gelu_linear(x, w1, b1, w2):
    """f32 partial result of gelu(x @ w1 + b1) @ w2 (bias b2 NOT added here)."""
    h = jnp.dot(x, w1, preferred_element_type=jnp.float32)
    h = h + b1
    # Exact GELU (PyTorch nn.GELU() default, erf based), kept in f32.
    h = 0.5 * h * (1.0 + lax.erf(h * jnp.float32(_INV_SQRT2)))
    return jnp.dot(h.astype(w2.dtype), w2, preferred_element_type=jnp.float32)


def _mlp_kernel_resident(x_ref, w1_ref, b1_ref, w2_ref, b2_ref, o_ref):
    # Weights fully resident in VMEM (constant index_maps, loaded once).
    # Single grid axis over row tiles; no accumulator scratch needed.
    out = _linear_gelu_linear(x_ref[...], w1_ref[...], b1_ref[...], w2_ref[...])
    o_ref[...] = (out + b2_ref[...]).astype(o_ref.dtype)


def _mlp_kernel_reduce(x_ref, w1_ref, b1_ref, w2_ref, b2_ref, o_ref, acc_ref):
    # Hidden (2C) dimension split over grid axis 1; f32 accumulator in VMEM.
    h_idx = pl.program_id(1)

    @pl.when(h_idx == 0)
    def _():
        # Fold b2 into the accumulator init (saves a (tm, Cp) add at finalize).
        acc_ref[...] = jnp.broadcast_to(b2_ref[...], acc_ref.shape)

    acc_ref[...] += _linear_gelu_linear(
        x_ref[...], w1_ref[...], b1_ref[...], w2_ref[...]
    )

    @pl.when(h_idx == pl.num_programs(1) - 1)
    def _():
        o_ref[...] = acc_ref[...].astype(o_ref.dtype)


# ----------------------------------------------------------------------------
# Device / tiling helpers
# ----------------------------------------------------------------------------


def _round_up(n, m):
    return (n + m - 1) // m * m


@functools.lru_cache(maxsize=None)
def _tpu_generation():
    try:
        kind = jax.devices()[0].device_kind.lower()
    except Exception:
        return "unknown"
    if "v5" in kind:
        return "v5"
    if "v6" in kind:
        return "v6"
    if "v7" in kind or "7x" in kind:
        return "v7"
    return "unknown"


@functools.lru_cache(maxsize=None)
def _vmem_capacity_bytes(gen):
    cap = None
    try:
        cap = getattr(pltpu.get_tpu_info(), "vmem_capacity_bytes", None)
    except Exception:
        cap = None
    if not cap or cap <= 0:
        cap = {"v5": 128, "v6": 128, "v7": 64}.get(gen, 64) * 1024 * 1024
    return int(cap)


# Roofline-balanced row tiles per generation (weight-streaming regime).
_DEFAULT_TM = {"v5": 256, "v6": 640, "v7": 512}


def _estimate_vmem_bytes(tm, th, Cp, Hp, out_bpe, resident):
    """Conservative per-kernel VMEM footprint (weights counted double-buffered)."""
    del Hp  # footprint depends on the tile (th), not the full hidden size
    est = 2 * tm * Cp * 2              # x tile, double-buffered, bf16
    est += 2 * Cp * th * 2             # W1 tile(s), bf16
    est += 2 * th * Cp * 2             # W2 tile(s), bf16
    est += 2 * th * 4 + 2 * Cp * 4     # b1 / b2 tiles, f32
    est += 2 * tm * Cp * out_bpe       # output tile, double-buffered
    est += tm * th * 6                 # GELU intermediate (f32 + bf16 staging)
    if not resident:
        est += tm * Cp * 4             # f32 accumulator scratch
    return est


# ----------------------------------------------------------------------------
# Parameter preparation (hoisted off the per-call path)
# ----------------------------------------------------------------------------


class MLPParams(NamedTuple):
    w1p: jax.Array   # (Cp, Hp) bf16
    b1p: jax.Array   # (1, Hp)  f32
    w2p: jax.Array   # (Hp, Cp) bf16
    b2p: jax.Array   # (1, Cp)  f32
    c: int
    h: int


def prepare_mlp_params(w1, b1, w2, b2):
    """Pad to lane-dense shapes and cast weights to bf16 once, at init time."""
    C, H = w1.shape
    Cp = _round_up(C, 128)
    Hp = _round_up(H, 256)   # multiple of 256 so th in {256, 512, Hp} divides it
    w1p = jnp.pad(w1, ((0, Cp - C), (0, Hp - H))).astype(jnp.bfloat16)
    b1p = jnp.pad(b1, (0, Hp - H)).astype(jnp.float32).reshape(1, Hp)
    w2p = jnp.pad(w2, ((0, Hp - H), (0, Cp - C))).astype(jnp.bfloat16)
    b2p = jnp.pad(b2, (0, Cp - C)).astype(jnp.float32).reshape(1, Cp)
    return MLPParams(w1p, b1p, w2p, b2p, int(C), int(H))


# ----------------------------------------------------------------------------
# Forward pass
# ----------------------------------------------------------------------------


def mlp_pallas_prepared(x, params, *, tm=None, _force_reduction=False):
    """x: (..., C). Returns gelu(x @ w1 + b1) @ w2 + b2 with x's shape/dtype."""
    orig_shape = x.shape
    C = params.c
    assert orig_shape[-1] == C, "last dim of x must equal the MLP channel size"
    Cp, Hp = params.w1p.shape
    out_dtype = x.dtype
    out_bpe = jnp.dtype(out_dtype).itemsize

    x2d = x.reshape(-1, C)
    M = x2d.shape[0]

    gen = _tpu_generation()
    budget = int(0.85 * _vmem_capacity_bytes(gen))

    # ---- Row tile (generation-aware, clipped to the problem size) --------
    if tm is None:
        tm = _DEFAULT_TM.get(gen, 256)
    tm = min(_round_up(tm, 16), _round_up(M, 16))

    # ---- Hidden tile: weight-resident path when everything fits in VMEM --
    if (not _force_reduction) and (
        _estimate_vmem_bytes(tm, Hp, Cp, Hp, out_bpe, resident=True) <= budget
    ):
        th = Hp
    elif Hp % 512 == 0 and (
        _estimate_vmem_bytes(tm, 512, Cp, Hp, out_bpe, resident=False) <= budget
    ):
        th = 512
    else:
        th = min(256, Hp)
    resident = th == Hp and not _force_reduction

    # If still over budget (huge C on small-VMEM chips), shrink the row tile.
    while (
        _estimate_vmem_bytes(tm, th, Cp, Hp, out_bpe, resident) > budget and tm > 64
    ):
        tm = max(64, _round_up(tm // 2, 16))

    Mp = _round_up(M, tm)

    # ---- Pad + cast activations (zero padding is exact: gelu(0) == 0) ----
    if (Mp, Cp) != (M, C):
        x2d = jnp.pad(x2d, ((0, Mp - M), (0, Cp - C)))
    xp = x2d.astype(jnp.bfloat16)

    est = _estimate_vmem_bytes(tm, th, Cp, Hp, out_bpe, resident)
    vmem_limit = min(max(int(1.2 * est), 32 * 1024 * 1024), budget)

    if resident:
        grid = (Mp // tm,)
        in_specs = [
            pl.BlockSpec((tm, Cp), lambda i: (i, 0)),   # x row tile
            pl.BlockSpec((Cp, Hp), lambda i: (0, 0)),   # W1 (resident)
            pl.BlockSpec((1, Hp), lambda i: (0, 0)),    # b1 (resident)
            pl.BlockSpec((Hp, Cp), lambda i: (0, 0)),   # W2 (resident)
            pl.BlockSpec((1, Cp), lambda i: (0, 0)),    # b2 (resident)
        ]
        out_specs = pl.BlockSpec((tm, Cp), lambda i: (i, 0))
        scratch_shapes = ()
        kernel = _mlp_kernel_resident
        dim_sem = ("parallel",)
    else:
        grid = (Mp // tm, Hp // th)
        in_specs = [
            pl.BlockSpec((tm, Cp), lambda i, h: (i, 0)),   # x row tile
            pl.BlockSpec((Cp, th), lambda i, h: (0, h)),   # W1 hidden tile
            pl.BlockSpec((1, th), lambda i, h: (0, h)),    # b1 hidden tile
            pl.BlockSpec((th, Cp), lambda i, h: (h, 0)),   # W2 hidden tile
            pl.BlockSpec((1, Cp), lambda i, h: (0, 0)),    # b2
        ]
        out_specs = pl.BlockSpec((tm, Cp), lambda i, h: (i, 0))
        scratch_shapes = (pltpu.VMEM((tm, Cp), jnp.float32),)
        kernel = _mlp_kernel_reduce
        dim_sem = ("parallel", "arbitrary")

    out = pl.pallas_call(
        kernel,
        out_shape=jax.ShapeDtypeStruct((Mp, Cp), out_dtype),
        grid_spec=pltpu.PrefetchScalarGridSpec(
            num_scalar_prefetch=0,
            grid=grid,
            in_specs=in_specs,
            out_specs=out_specs,
            scratch_shapes=scratch_shapes,
        ),
        compiler_params=pltpu.CompilerParams(
            dimension_semantics=dim_sem,
            vmem_limit_bytes=vmem_limit,
        ),
    )(xp, params.w1p, params.b1p, params.w2p, params.b2p)

    return out[:M, :C].reshape(orig_shape)


def mlp_pallas(x, w1, b1, w2, b2, *, tm=None):
    """Convenience wrapper (pads/casts weights on the fly; prefer prepare_mlp_params)."""
    return mlp_pallas_prepared(x, prepare_mlp_params(w1, b1, w2, b2), tm=tm)


# ----------------------------------------------------------------------------
# Reference + init (match nn.Linear / nn.GELU defaults)
# ----------------------------------------------------------------------------


def init_mlp_params(key, channel, dtype=jnp.float32):
    """Deterministic init matching nn.Linear default uniform(-1/sqrt(fan_in), +)."""
    hidden = 2 * channel
    k1, k2, k3, k4 = jax.random.split(key, 4)
    bound1 = 1.0 / math.sqrt(channel)
    bound2 = 1.0 / math.sqrt(hidden)
    # Stored transposed vs PyTorch (out_features, in_features): kernel does x @ W.
    w1 = jax.random.uniform(k1, (channel, hidden), dtype, -bound1, bound1)
    b1 = jax.random.uniform(k2, (hidden,), dtype, -bound1, bound1)
    w2 = jax.random.uniform(k3, (hidden, channel), dtype, -bound2, bound2)
    b2 = jax.random.uniform(k4, (channel,), dtype, -bound2, bound2)
    return w1, b1, w2, b2


def mlp_reference(x, w1, b1, w2, b2):
    h = x @ w1 + b1
    h = 0.5 * h * (1.0 + lax.erf(h / jnp.sqrt(jnp.float32(2.0))))
    return h @ w2 + b2


if __name__ == "__main__":
    key = jax.random.PRNGKey(0)

    # --- Test 1: small spec shape; pre-padded params + weight-resident path --
    kx, kp, key = jax.random.split(key, 3)
    batch, seq, channel = 2, 8, 32
    x = jax.random.normal(kx, (batch, seq, channel), dtype=jnp.float32)
    w1, b1, w2, b2 = init_mlp_params(kp, channel)
    prep = prepare_mlp_params(w1, b1, w2, b2)   # hoisted pad/cast (done once)

    out = jax.block_until_ready(mlp_pallas_prepared(x, prep))
    ref = mlp_reference(x, w1, b1, w2, b2)
    assert out.shape == x.shape
    # bf16 matmul operands with f32 accumulation -> loose tolerance.
    assert jnp.allclose(out, ref, atol=2e-2, rtol=2e-2), "mismatch vs reference (test 1)"

    # --- Test 2: non-aligned M and C exercise row/lane padding ---------------
    kx2, kp2, key = jax.random.split(key, 3)
    batch2, seq2, channel2 = 3, 100, 96
    x2 = jax.random.normal(kx2, (batch2, seq2, channel2), dtype=jnp.float32)
    w1b, b1b, w2b, b2b = init_mlp_params(kp2, channel2)
    out2 = jax.block_until_ready(mlp_pallas(x2, w1b, b1b, w2b, b2b))
    ref2 = mlp_reference(x2, w1b, b1b, w2b, b2b)
    assert out2.shape == x2.shape
    assert jnp.allclose(out2, ref2, atol=2e-2, rtol=2e-2), "mismatch vs reference (test 2)"

    # --- Test 3: force the hidden-reduction fallback path (large-C regime) ---
    kx3, kp3 = jax.random.split(key)
    batch3, seq3, channel3 = 2, 16, 256   # H=512 -> two hidden tiles of 256
    x3 = jax.random.normal(kx3, (batch3, seq3, channel3), dtype=jnp.float32)
    w1c, b1c, w2c, b2c = init_mlp_params(kp3, channel3)
    prep3 = prepare_mlp_params(w1c, b1c, w2c, b2c)
    out3 = jax.block_until_ready(
        mlp_pallas_prepared(x3, prep3, _force_reduction=True)
    )
    ref3 = mlp_reference(x3, w1c, b1c, w2c, b2c)
    assert out3.shape == x3.shape
    assert jnp.allclose(out3, ref3, atol=2e-2, rtol=2e-2), "mismatch vs reference (test 3)"

    print("KERNEL_OK")
</pallas_src>

<mosaic_0001>
module attributes {stable_mosaic.version = 11 : i64} {
  func.func @_mlp_kernel_resident(%arg0: i32, %arg1: memref<16x128xbf16, #tpu.memory_space<vmem>>, %arg2: memref<128x256xbf16, #tpu.memory_space<vmem>>, %arg3: memref<1x256xf32, #tpu.memory_space<vmem>>, %arg4: memref<256x128xbf16, #tpu.memory_space<vmem>>, %arg5: memref<1x128xf32, #tpu.memory_space<vmem>>, %arg6: memref<16x128xf32, #tpu.memory_space<vmem>>) attributes {dimension_semantics = [#tpu.dimension_semantics<parallel>], iteration_bounds = array<i64: 1>, scalar_prefetch = 0 : i64, scratch_operands = 0 : i64, tpu.core_type = #tpu.core_type<tc>, window_params = [{transform_indices = @transform_0, window_bounds = array<i64: 16, 128>}, {pipeline_mode = #tpu.pipeline_mode<synchronous>, transform_indices = @transform_1, window_bounds = array<i64: 128, 256>}, {pipeline_mode = #tpu.pipeline_mode<synchronous>, transform_indices = @transform_2, window_bounds = array<i64: 1, 256>}, {pipeline_mode = #tpu.pipeline_mode<synchronous>, transform_indices = @transform_3, window_bounds = array<i64: 256, 128>}, {pipeline_mode = #tpu.pipeline_mode<synchronous>, transform_indices = @transform_4, window_bounds = array<i64: 1, 128>}, {transform_indices = @transform_5, window_bounds = array<i64: 16, 128>}]} {
    %c0 = arith.constant 0 : index
    %c0_0 = arith.constant 0 : index
    %0 = vector.load %arg1[%c0, %c0_0] : memref<16x128xbf16, #tpu.memory_space<vmem>>, vector<16x128xbf16>
    %c0_1 = arith.constant 0 : index
    %c0_2 = arith.constant 0 : index
    %1 = vector.load %arg2[%c0_1, %c0_2] : memref<128x256xbf16, #tpu.memory_space<vmem>>, vector<128x256xbf16>
    %c0_3 = arith.constant 0 : index
    %c0_4 = arith.constant 0 : index
    %2 = vector.load %arg3[%c0_3, %c0_4] : memref<1x256xf32, #tpu.memory_space<vmem>>, vector<1x256xf32>
    %c0_5 = arith.constant 0 : index
    %c0_6 = arith.constant 0 : index
    %3 = vector.load %arg4[%c0_5, %c0_6] : memref<256x128xbf16, #tpu.memory_space<vmem>>, vector<256x128xbf16>
    %cst = arith.constant dense<0.000000e+00> : vector<16x256xf32>
    %4 = tpu.matmul %0, %1, %cst {dimension_numbers = #tpu.dot_dimension_numbers<[1], [0], [0], [1], [0, 0, 1, 1], [], []>} : vector<16x128xbf16>, vector<128x256xbf16>, vector<16x256xf32> -> vector<16x256xf32>
    %5 = vector.broadcast %2 : vector<1x256xf32> to vector<16x256xf32>
    %6 = arith.addf %4, %5 : vector<16x256xf32>
    %cst_7 = arith.constant 5.000000e-01 : f32
    %7 = vector.broadcast %cst_7 : f32 to vector<16x256xf32>
    %8 = arith.mulf %7, %6 : vector<16x256xf32>
    %cst_8 = arith.constant 0.707106769 : f32
    %9 = vector.broadcast %cst_8 : f32 to vector<16x256xf32>
    %10 = arith.mulf %6, %9 : vector<16x256xf32>
    %11 = math.erf %10 : vector<16x256xf32>
    %cst_9 = arith.constant 1.000000e+00 : f32
    %12 = vector.broadcast %cst_9 : f32 to vector<16x256xf32>
    %13 = arith.addf %12, %11 : vector<16x256xf32>
    %14 = arith.mulf %8, %13 : vector<16x256xf32>
    %15 = arith.truncf %14 : vector<16x256xf32> to vector<16x256xbf16>
    %cst_10 = arith.constant dense<0.000000e+00> : vector<16x128xf32>
    %16 = tpu.matmul %15, %3, %cst_10 {dimension_numbers = #tpu.dot_dimension_numbers<[1], [0], [0], [1], [0, 0, 1, 1], [], []>} : vector<16x256xbf16>, vector<256x128xbf16>, vector<16x128xf32> -> vector<16x128xf32>
    %c0_11 = arith.constant 0 : index
    %c0_12 = arith.constant 0 : index
    %17 = vector.load %arg5[%c0_11, %c0_12] : memref<1x128xf32, #tpu.memory_space<vmem>>, vector<1x128xf32>
    %18 = vector.broadcast %17 : vector<1x128xf32> to vector<16x128xf32>
    %19 = arith.addf %16, %18 : vector<16x128xf32>
    %c0_13 = arith.constant 0 : index
    %c0_14 = arith.constant 0 : index
    %20 = vector.load %arg6[%c0_13, %c0_14] : memref<16x128xf32, #tpu.memory_space<vmem>>, vector<16x128xf32>
    tpu.vector_store %arg6[%c0_13, %c0_14], %19 {strides = array<i32>} : memref<16x128xf32, #tpu.memory_space<vmem>>, vector<16x128xf32>,
    return
  }
  func.func @transform_0(%arg0: i32) -> (i32, i32) {
    %c0_i32 = arith.constant 0 : i32
    %c0_i32_0 = arith.constant 0 : i32
    return %arg0, %c0_i32 : i32, i32
  }
  func.func @transform_1(%arg0: i32) -> (i32, i32) {
    %c0_i32 = arith.constant 0 : i32
    %c0_i32_0 = arith.constant 0 : i32
    %c0_i32_1 = arith.constant 0 : i32
    return %c0_i32, %c0_i32_0 : i32, i32
  }
  func.func @transform_2(%arg0: i32) -> (i32, i32) {
    %c0_i32 = arith.constant 0 : i32
    %c0_i32_0 = arith.constant 0 : i32
    %c0_i32_1 = arith.constant 0 : i32
    return %c0_i32, %c0_i32_0 : i32, i32
  }
  func.func @transform_3(%arg0: i32) -> (i32, i32) {
    %c0_i32 = arith.constant 0 : i32
    %c0_i32_0 = arith.constant 0 : i32
    %c0_i32_1 = arith.constant 0 : i32
    return %c0_i32, %c0_i32_0 : i32, i32
  }
  func.func @transform_4(%arg0: i32) -> (i32, i32) {
    %c0_i32 = arith.constant 0 : i32
    %c0_i32_0 = arith.constant 0 : i32
    %c0_i32_1 = arith.constant 0 : i32
    return %c0_i32, %c0_i32_0 : i32, i32
  }
  func.func @transform_5(%arg0: i32) -> (i32, i32) {
    %c0_i32 = arith.constant 0 : i32
    %c0_i32_0 = arith.constant 0 : i32
    return %arg0, %c0_i32 : i32, i32
  }
}

</mosaic_0001>

<llo_original>
// kernel: tpu_custom_call.1
$region0: #{tpu_custom_call.1}
  #allocation0 [shape = 'u32[]', space=smem, size = 0x4, offset = 0x4, fixed_abs, tag = 'smem constant byte address 0x4 - core index']
  #allocation1 [shape = 'u32[144,128]{1,0:T(1,128)}', space=vmem, size = 0x12000, scoped, tag = 'internal scratch']
  %s0 = inlined_call_operand.hbm [shape: bf16[16,128], index: 0, kind: input, shape index: {}]
  %s1 = inlined_call_operand.hbm [shape: bf16[128,256], index: 1, kind: input, shape index: {}]
  %s2 = inlined_call_operand.vmem [shape: f32[1,256], index: 2, kind: input, shape index: {}]
  %s3 = inlined_call_operand.hbm [shape: bf16[256,128], index: 3, kind: input, shape index: {}]
  %s4 = inlined_call_operand.vmem [shape: f32[1,128], index: 4, kind: input, shape index: {}]
  %s5 = inlined_call_operand.hbm [shape: f32[16,128], index: 5, kind: output, shape index: {}]
  %s6 = sld [smem:[#allocation0]]
  $region42: #{tpu_custom_call.1} parent=0
    _
  %s8 = ssub.s32 1, %s6
  %s9 = scalar_select 0, %s8, %s6
  $region1: #{tpu_custom_call.1} parent=0
    #allocation2 [shape = 'u8[4096]{0}', space=vmem, size = 0x1000, scoped, tag = 'input window, operand 0, single buffered']
    #allocation3 [shape = 's32[1]{0}', space=sflag, size = 0x4, scoped, tag = 'scoped memory for tpu_custom_call.1']
    #allocation4 [shape = 's32[1]{0}', space=sflag, size = 0x4, scoped, tag = 'scoped memory for tpu_custom_call.1']
    #allocation5 [shape = 'u8[65536]{0}', space=vmem, size = 0x10000, scoped, tag = 'input window, operand 1, single buffered']
    #allocation6 [shape = 's32[1]{0}', space=sflag, size = 0x4, scoped, tag = 'scoped memory for tpu_custom_call.1']
    #allocation7 [shape = 'u8[65536]{0}', space=vmem, size = 0x10000, scoped, tag = 'input window, operand 3, single buffered']
    #allocation8 [shape = 'u8[8192]{0}', space=vmem, size = 0x2000, scoped, tag = 'output window, operand 0, single buffered']
    %10 = vsyncpa [#allocation3], 0
    %11 = vsyncpa [#allocation6], 0
    %12 = vsyncpa [#allocation4], 0
    // Predicated region
    $region2: #{tpu_custom_call.1} parent=1 // pred_check
      _
    $region3: #{tpu_custom_call.1} parent=1 // pred_check_branch
      %14 = sbr.rel (0) target = $region5
    $region4: #{tpu_custom_call.1} parent=1 // pred_region
      %s16 = ssub.s32 128, 128
      %17 = vsyncadd [#allocation3], %s16
      %s18 = sshll.u32 [#allocation2], 4
      %s19 = int_to_ptr.vmem [resolvable:$true] %s18
      %24 = dma.hbm_to_vmem [thread:$0]  %s0, 128, %s19, [#allocation3], 64, 64, 4
    $region5: #{tpu_custom_call.1} parent=1 // pred_fallthru
      _
    // Predicated region
    $region6: #{tpu_custom_call.1} parent=1 // pred_check
      _
    $region7: #{tpu_custom_call.1} parent=1 // pred_check_branch
      %26 = sbr.rel (0) target = $region9
    $region8: #{tpu_custom_call.1} parent=1 // pred_region
      %s28 = ssub.s32 2048, 2048
      %29 = vsyncadd [#allocation6], %s28
      %s30 = sshll.u32 [#allocation5], 4
      %s31 = int_to_ptr.vmem [resolvable:$true] %s30
      %36 = dma.hbm_to_vmem [thread:$0]  %s1, 2048, %s31, [#allocation6], 128, 128, 8
    $region9: #{tpu_custom_call.1} parent=1 // pred_fallthru
      _
    // Predicated region
    $region10: #{tpu_custom_call.1} parent=1 // pred_check
      _
    $region11: #{tpu_custom_call.1} parent=1 // pred_check_branch
      %38 = sbr.rel (0) target = $region13
    $region12: #{tpu_custom_call.1} parent=1 // pred_region
      _
    $region13: #{tpu_custom_call.1} parent=1 // pred_fallthru
      _
    // Predicated region
    $region14: #{tpu_custom_call.1} parent=1 // pred_check
      _
    $region15: #{tpu_custom_call.1} parent=1 // pred_check_branch
      %40 = sbr.rel (0) target = $region17
    $region16: #{tpu_custom_call.1} parent=1 // pred_region
      %s42 = ssub.s32 2048, 2048
      %43 = vsyncadd [#allocation6], %s42
      %s44 = sshll.u32 [#allocation7], 4
      %s45 = int_to_ptr.vmem [resolvable:$true] %s44
      %50 = dma.hbm_to_vmem [thread:$0]  %s3, 2048, %s45, [#allocation6], 64, 64, 4
    $region17: #{tpu_custom_call.1} parent=1 // pred_fallthru
      _
    // Predicated region
    $region18: #{tpu_custom_call.1} parent=1 // pred_check
      _
    $region19: #{tpu_custom_call.1} parent=1 // pred_check_branch
      %52 = sbr.rel (0) target = $region21
    $region20: #{tpu_custom_call.1} parent=1 // pred_region
      _
    $region21: #{tpu_custom_call.1} parent=1 // pred_fallthru
      _
    // Predicated region
    $region22: #{tpu_custom_call.1} parent=1 // pred_check
      _
    $region23: #{tpu_custom_call.1} parent=1 // pred_check_branch
      %54 = sbr.rel (0) target = $region25
    $region24: #{tpu_custom_call.1} parent=1 // pred_region
      %55 = dma.done [#allocation3], 128
    $region25: #{tpu_custom_call.1} parent=1 // pred_fallthru
      _
    // Predicated region
    $region26: #{tpu_custom_call.1} parent=1 // pred_check
      _
    $region27: #{tpu_custom_call.1} parent=1 // pred_check_branch
      %57 = sbr.rel (0) target = $region29
    $region28: #{tpu_custom_call.1} parent=1 // pred_region
      %58 = dma.done [#allocation6], 2048
    $region29: #{tpu_custom_call.1} parent=1 // pred_fallthru
      _
    // Predicated region
    $region30: #{tpu_custom_call.1} parent=1 // pred_check
      _
    $region31: #{tpu_custom_call.1} parent=1 // pred_check_branch
      %60 = sbr.rel (0) target = $region33
    $region32: #{tpu_custom_call.1} parent=1 // pred_region
      %61 = dma.done [#allocation6], 2048
    $region33: #{tpu_custom_call.1} parent=1 // pred_fallthru
      _
    %v63 = vld [vmem:[#allocation2] sm:$0xf]
    %v64 = vld [vmem:[#allocation2 + $0x4] sm:$0xf]
    %v65 = vld [vmem:[#allocation5] sm:$0xff]
    %v66 = vld [vmem:[#allocation5 + $0x8] sm:$0xff]
    %v67 = vld [vmem:[#allocation5 + $0x10] sm:$0xff]
    %v68 = vld [vmem:[#allocation5 + $0x18] sm:$0xff]
    %v69 = vld [vmem:[#allocation5 + $0x20] sm:$0xff]
    %v70 = vld [vmem:[#allocation5 + $0x28] sm:$0xff]
    %v71 = vld [vmem:[#allocation5 + $0x30] sm:$0xff]
    %v72 = vld [vmem:[#allocation5 + $0x38] sm:$0xff]
    %v73 = vld [vmem:[#allocation5 + $0x40] sm:$0xff]
    %v74 = vld [vmem:[#allocation5 + $0x48] sm:$0xff]
    %v75 = vld [vmem:[#allocation5 + $0x50] sm:$0xff]
    %v76 = vld [vmem:[#allocation5 + $0x58] sm:$0xff]
    %v77 = vld [vmem:[#allocation5 + $0x60] sm:$0xff]
    %v78 = vld [vmem:[#allocation5 + $0x68] sm:$0xff]
    %v79 = vld [vmem:[#allocation5 + $0x70] sm:$0xff]
    %v80 = vld [vmem:[#allocation5 + $0x78] sm:$0xff]
    %v81 = vld [vmem:[%s2] sm:$0x3]
    %v82 = vld [vmem:[#allocation7] sm:$0xf]
    %v83 = vld [vmem:[#allocation7 + $0x4] sm:$0xf]
    %v84 = vld [vmem:[#allocation7 + $0x8] sm:$0xf]
    %v85 = vld [vmem:[#allocation7 + $0xc] sm:$0xf]
    %v86 = vld [vmem:[#allocation7 + $0x10] sm:$0xf]
    %v87 = vld [vmem:[#allocation7 + $0x14] sm:$0xf]
    %v88 = vld [vmem:[#allocation7 + $0x18] sm:$0xf]
    %v89 = vld [vmem:[#allocation7 + $0x1c] sm:$0xf]
    %v90 = vld [vmem:[#allocation7 + $0x20] sm:$0xf]
    %v91 = vld [vmem:[#allocation7 + $0x24] sm:$0xf]
    %v92 = vld [vmem:[#allocation7 + $0x28] sm:$0xf]
    %v93 = vld [vmem:[#allocation7 + $0x2c] sm:$0xf]
    %v94 = vld [vmem:[#allocation7 + $0x30] sm:$0xf]
    %v95 = vld [vmem:[#allocation7 + $0x34] sm:$0xf]
    %v96 = vld [vmem:[#allocation7 + $0x38] sm:$0xf]
    %v97 = vld [vmem:[#allocation7 + $0x3c] sm:$0xf]
    %v98 = vld [vmem:[#allocation7 + $0x40] sm:$0xf]
    %v99 = vld [vmem:[#allocation7 + $0x44] sm:$0xf]
    %v100 = vld [vmem:[#allocation7 + $0x48] sm:$0xf]
    %v101 = vld [vmem:[#allocation7 + $0x4c] sm:$0xf]
    %v102 = vld [vmem:[#allocation7 + $0x50] sm:$0xf]
    %v103 = vld [vmem:[#allocation7 + $0x54] sm:$0xf]
    %v104 = vld [vmem:[#allocation7 + $0x58] sm:$0xf]
    %v105 = vld [vmem:[#allocation7 + $0x5c] sm:$0xf]
    %v106 = vld [vmem:[#allocation7 + $0x60] sm:$0xf]
    %v107 = vld [vmem:[#allocation7 + $0x64] sm:$0xf]
    %v108 = vld [vmem:[#allocation7 + $0x68] sm:$0xf]
    %v109 = vld [vmem:[#allocation7 + $0x6c] sm:$0xf]
    %v110 = vld [vmem:[#allocation7 + $0x70] sm:$0xf]
    %v111 = vld [vmem:[#allocation7 + $0x74] sm:$0xf]
    %v112 = vld [vmem:[#allocation7 + $0x78] sm:$0xf]
    %v113 = vld [vmem:[#allocation7 + $0x7c] sm:$0xf]
    %v115 = vlaneseq
    %v116 = vshrl.u32 %v115, 7
    %v117 = vsub.s32 0, %v116
    %v118 = vrot.slane %v81, %v117
    %v119 = vlaneseq
    %v120 = vshrl.u32 %v119, 7
    %v121 = vsub.s32 1, %v120
    %v122 = vrot.slane %v81, %v121
    %v127 = vunpack.c.l.b16 %v63
    %v128 = vunpack.c.l.b16 %v64
    %v129 = vpack.c.b16 %v128, %v127
    %v147 = vunpack.c.l.b16 %v65
    %v148 = vunpack.c.h.b16 %v65
    %v149 = vunpack.c.l.b16 %v66
    %v150 = vunpack.c.h.b16 %v66
    %v151 = vunpack.c.l.b16 %v67
    %v152 = vunpack.c.h.b16 %v67
    %v153 = vunpack.c.l.b16 %v68
    %v154 = vunpack.c.h.b16 %v68
    %v155 = vunpack.c.l.b16 %v69
    %v156 = vunpack.c.h.b16 %v69
    %v157 = vunpack.c.l.b16 %v70
    %v158 = vunpack.c.h.b16 %v70
    %v159 = vunpack.c.l.b16 %v71
    %v160 = vunpack.c.h.b16 %v71
    %v161 = vunpack.c.l.b16 %v72
    %v162 = vunpack.c.h.b16 %v72
    %v163 = vunpack.c.l.b16 %v73
    %v164 = vunpack.c.h.b16 %v73
    %v165 = vunpack.c.l.b16 %v74
    %v166 = vunpack.c.h.b16 %v74
    %v167 = vunpack.c.l.b16 %v75
    %v168 = vunpack.c.h.b16 %v75
    %v169 = vunpack.c.l.b16 %v76
    %v170 = vunpack.c.h.b16 %v76
    %v171 = vunpack.c.l.b16 %v77
    %v172 = vunpack.c.h.b16 %v77
    %v173 = vunpack.c.l.b16 %v78
    %v174 = vunpack.c.h.b16 %v78
    %v175 = vunpack.c.l.b16 %v79
    %v176 = vunpack.c.h.b16 %v79
    %v177 = vunpack.c.l.b16 %v80
    %v178 = vunpack.c.h.b16 %v80
    %v179 = vpack.c.b16 %v149, %v147
    %v180 = vpack.c.b16 %v150, %v148
    %v181 = vpack.c.b16 %v153, %v151
    %v182 = vpack.c.b16 %v154, %v152
    %v183 = vpack.c.b16 %v157, %v155
    %v184 = vpack.c.b16 %v158, %v156
    %v185 = vpack.c.b16 %v161, %v159
    %v186 = vpack.c.b16 %v162, %v160
    %v187 = vpack.c.b16 %v165, %v163
    %v188 = vpack.c.b16 %v166, %v164
    %v189 = vpack.c.b16 %v169, %v167
    %v190 = vpack.c.b16 %v170, %v168
    %v191 = vpack.c.b16 %v173, %v171
    %v192 = vpack.c.b16 %v174, %v172
    %v193 = vpack.c.b16 %v177, %v175
    %v194 = vpack.c.b16 %v178, %v176
    %211 = vmatprep.subr.bf16.mxu0 %v194
    %212 = vmatpush1.bf16.msra.mxu0 %v193
    %213 = vmatprep.subr.bf16.mxu0 %v192
    %214 = vmatpush1.bf16.msra.mxu0 %v191
    %215 = vmatprep.subr.bf16.mxu0 %v190
    %216 = vmatpush1.bf16.msra.mxu0 %v189
    %217 = vmatprep.subr.bf16.mxu0 %v188
    %218 = vmatpush1.bf16.msra.mxu0 %v187
    %219 = vmatprep.subr.bf16.mxu0 %v186
    %220 = vmatpush1.bf16.msra.mxu0 %v185
    %221 = vmatprep.subr.bf16.mxu0 %v184
    %222 = vmatpush1.bf16.msra.mxu0 %v183
    %223 = vmatprep.subr.bf16.mxu0 %v182
    %224 = vmatpush1.bf16.msra.mxu0 %v181
    %225 = vmatprep.subr.bf16.mxu0 %v180
    %226 = vmatpush1.bf16.msra.mxu0 %v179
    %227 = vmatprep.subr.bf16.mxu0 0
    %228 = vmatpush2.bf16.msra.mxu0 0
    %229 = vmatprep.subr.bf16.mxu0 0
    %230 = vmatpush2.bf16.msra.mxu0 0
    %231 = vmatprep.subr.bf16.mxu0 0
    %232 = vmatpush2.bf16.msra.mxu0 0
    %233 = vmatprep.subr.bf16.mxu0 0
    %234 = vmatpush2.bf16.msra.mxu0 0
    %235 = vmatprep.subr.bf16.mxu0 0
    %236 = vmatpush2.bf16.msra.mxu0 0
    %237 = vmatprep.subr.bf16.mxu0 0
    %238 = vmatpush2.bf16.msra.mxu0 0
    %239 = vmatprep.subr.bf16.mxu0 0
    %240 = vmatpush2.bf16.msra.mxu0 0
    %241 = vmatprep.subr.bf16.mxu0 0
    %242 = vmatpush2.bf16.msra.mxu0 0
    %243 = vmatprep.mubr.bf16.mxu0 0
    %244 = vmatmul.mubr.bf16.gmra.mxu0 %v129
    %v245 = vpop.f32.mrf.mxu0
    %v246 = vadd.f32 %v118, %v245
    %v247 = vpop.f32.mrf.mxu0
    %v248 = vadd.f32 %v122, %v247
    %v249 = vpop.f32.mrf.mxu0
    %v250 = vadd.f32 %v118, %v249
    %v251 = vpop.f32.mrf.mxu0
    %v252 = vadd.f32 %v122, %v251
    %253 = vdwg.mxu0
    %v254 = vmul.f32 %v246, 0.5
    %v255 = vmul.f32 %v248, 0.5
    %v256 = vmul.f32 %v250, 0.5
    %v257 = vmul.f32 %v252, 0.5
    %v258 = vmul.f32 %v246, 0.70710677
    %v259 = vmul.f32 %v248, 0.70710677
    %v260 = vmul.f32 %v250, 0.70710677
    %v261 = vmul.f32 %v252, 0.70710677
    %v262 = verf.f32.pop %v258
    %v263 = verf.f32.pop %v259
    %v264 = verf.f32.pop %v260
    %v265 = verf.f32.pop %v261
    %v266 = vadd.f32 %v262, 1.0
    %v267 = vadd.f32 %v263, 1.0
    %v268 = vadd.f32 %v264, 1.0
    %v269 = vadd.f32 %v265, 1.0
    %v270 = vmul.f32 %v254, %v266
    %v271 = vmul.f32 %v255, %v267
    %v272 = vmul.f32 %v256, %v268
    %v273 = vmul.f32 %v257, %v269
    %v274 = vpack.c.bf16 %v272, %v270
    %v275 = vpack.c.bf16 %v273, %v271
    %v276 = vld [vmem:[%s4] sm:$0x1]
    %v278 = vlaneseq
    %v279 = vshrl.u32 %v278, 7
    %v280 = vsub.s32 0, %v279
    %v281 = vrot.slane %v276, %v280
    %v315 = vunpack.c.l.b16 %v82
    %v316 = vunpack.c.l.b16 %v83
    %v317 = vunpack.c.l.b16 %v84
    %v318 = vunpack.c.l.b16 %v85
    %v319 = vunpack.c.l.b16 %v86
    %v320 = vunpack.c.l.b16 %v87
    %v321 = vunpack.c.l.b16 %v88
    %v322 = vunpack.c.l.b16 %v89
    %v323 = vunpack.c.l.b16 %v90
    %v324 = vunpack.c.l.b16 %v91
    %v325 = vunpack.c.l.b16 %v92
    %v326 = vunpack.c.l.b16 %v93
    %v327 = vunpack.c.l.b16 %v94
    %v328 = vunpack.c.l.b16 %v95
    %v329 = vunpack.c.l.b16 %v96
    %v330 = vunpack.c.l.b16 %v97
    %v331 = vunpack.c.l.b16 %v98
    %v332 = vunpack.c.l.b16 %v99
    %v333 = vunpack.c.l.b16 %v100
    %v334 = vunpack.c.l.b16 %v101
    %v335 = vunpack.c.l.b16 %v102
    %v336 = vunpack.c.l.b16 %v103
    %v337 = vunpack.c.l.b16 %v104
    %v338 = vunpack.c.l.b16 %v105
    %v339 = vunpack.c.l.b16 %v106
    %v340 = vunpack.c.l.b16 %v107
    %v341 = vunpack.c.l.b16 %v108
    %v342 = vunpack.c.l.b16 %v109
    %v343 = vunpack.c.l.b16 %v110
    %v344 = vunpack.c.l.b16 %v111
    %v345 = vunpack.c.l.b16 %v112
    %v346 = vunpack.c.l.b16 %v113
    %v347 = vpack.c.b16 %v316, %v315
    %v348 = vpack.c.b16 %v318, %v317
    %v349 = vpack.c.b16 %v320, %v319
    %v350 = vpack.c.b16 %v322, %v321
    %v351 = vpack.c.b16 %v324, %v323
    %v352 = vpack.c.b16 %v326, %v325
    %v353 = vpack.c.b16 %v328, %v327
    %v354 = vpack.c.b16 %v330, %v329
    %v355 = vpack.c.b16 %v332, %v331
    %v356 = vpack.c.b16 %v334, %v333
    %v357 = vpack.c.b16 %v336, %v335
    %v358 = vpack.c.b16 %v338, %v337
    %v359 = vpack.c.b16 %v340, %v339
    %v360 = vpack.c.b16 %v342, %v341
    %v361 = vpack.c.b16 %v344, %v343
    %v362 = vpack.c.b16 %v346, %v345
    %379 = vmatprep.subr.bf16.mxu0 0
    %380 = vmatpush1.bf16.msra.mxu0 %v354
    %381 = vmatprep.subr.bf16.mxu0 0
    %382 = vmatpush1.bf16.msra.mxu0 %v353
    %383 = vmatprep.subr.bf16.mxu0 0
    %384 = vmatpush1.bf16.msra.mxu0 %v352
    %385 = vmatprep.subr.bf16.mxu0 0
    %386 = vmatpush1.bf16.msra.mxu0 %v351
    %387 = vmatprep.subr.bf16.mxu0 0
    %388 = vmatpush1.bf16.msra.mxu0 %v350
    %389 = vmatprep.subr.bf16.mxu0 0
    %390 = vmatpush1.bf16.msra.mxu0 %v349
    %391 = vmatprep.subr.bf16.mxu0 0
    %392 = vmatpush1.bf16.msra.mxu0 %v348
    %393 = vmatprep.subr.bf16.mxu0 0
    %394 = vmatpush1.bf16.msra.mxu0 %v347
    %395 = vmatprep.subr.bf16.mxu0 0
    %396 = vmatpush2.bf16.msra.mxu0 %v362
    %397 = vmatprep.subr.bf16.mxu0 0
    %398 = vmatpush2.bf16.msra.mxu0 %v361
    %399 = vmatprep.subr.bf16.mxu0 0
    %400 = vmatpush2.bf16.msra.mxu0 %v360
    %401 = vmatprep.subr.bf16.mxu0 0
    %402 = vmatpush2.bf16.msra.mxu0 %v359
    %403 = vmatprep.subr.bf16.mxu0 0
    %404 = vmatpush2.bf16.msra.mxu0 %v358
    %405 = vmatprep.subr.bf16.mxu0 0
    %406 = vmatpush2.bf16.msra.mxu0 %v357
    %407 = vmatprep.subr.bf16.mxu0 0
    %408 = vmatpush2.bf16.msra.mxu0 %v356
    %409 = vmatprep.subr.bf16.mxu0 0
    %410 = vmatpush2.bf16.msra.mxu0 %v355
    %411 = vmatprep.mubr.bf16.mxu0 %v275
    %412 = vmatmul.mubr.bf16.gmra.mxu0 %v274
    %v413 = vpop.f32.mrf.mxu0
    %v414 = vadd.f32 %v281, %v413
    %v415 = vpop.f32.mrf.mxu0
    %v416 = vpop.f32.mrf.mxu0
    %v417 = vadd.f32 %v281, %v416
    %v418 = vpop.f32.mrf.mxu0
    %419 = vdwg.mxu0
    %420 = vst [vmem:[#allocation8] sm:$0xff] %v414
    %421 = vst [vmem:[#allocation8 + $0x8] sm:$0xff] %v417
    // Predicated region
    $region34: #{tpu_custom_call.1} parent=1 // pred_check
      _
    $region35: #{tpu_custom_call.1} parent=1 // pred_check_branch
      %423 = sbr.rel (0) target = $region37
    $region36: #{tpu_custom_call.1} parent=1 // pred_region
      %s425 = ssub.s32 256, 256
      %426 = vsyncadd [#allocation4], %s425
      %s427 = sshll.u32 [#allocation8], 4
      %s428 = int_to_ptr.vmem [resolvable:$true] %s427
      %433 = dma.vmem_to_hbm [thread:$0]  %s428, 256, %s5, [#allocation4], 128, 128, 8
    $region37: #{tpu_custom_call.1} parent=1 // pred_fallthru
      _
    // Predicated region
    $region38: #{tpu_custom_call.1} parent=1 // pred_check
      _
    $region39: #{tpu_custom_call.1} parent=1 // pred_check_branch
      %435 = sbr.rel (0) target = $region41
    $region40: #{tpu_custom_call.1} parent=1 // pred_region
      %436 = dma.done [#allocation4], 256
    $region41: #{tpu_custom_call.1} parent=1 // pred_fallthru
      _
    %437 = vsyncpa [#allocation3], 1
    %438 = vsyncpa [#allocation6], 1
    %439 = vsyncpa [#allocation4], 1

</llo_original>
